<compile_context>
chip_gen: v7x
topology: tpu7x:2x2x1
jax: 0.10.0
libtpu: 0.0.40
codegen_flags: <defaults>
</compile_context>

<pallas_src>
import functools

import jax
import jax.numpy as jnp
from jax.experimental import pallas as pl
from jax.experimental.pallas import tpu as pltpu

LANE = 128            # last dim maps onto TPU lanes
MAX_TILE_ROWS = 8192  # 4 MiB per f32 buffer; multiple of 8 (f32) and 16 (bf16)
ROW_ALIGN = 16        # whole (8,128) f32 / (16,128) bf16 vregs per block
SPLIT_MIN_ROWS = 512  # only shape the grid for 2 cores above ~256 KiB f32


def _scaled_sigmoid_kernel(x_ref, o_ref, *, alpha: float, inv_alpha: float):
    x = x_ref[...]
    # f32 compute for accuracy / v5e (no bf16 VPU/EUP); cast back on store.
    xf = x.astype(jnp.float32)
    y = alpha * jax.nn.sigmoid(xf * inv_alpha)
    o_ref[...] = y.astype(o_ref.dtype)


def _choose_tile_rows(rows: int) -> int:
    """Pick a lane-dense row-tile: big enough to amortize per-step overhead,
    and (for larger tensors) an even number of grid steps for v7x's 2 TCs."""
    if rows <= ROW_ALIGN:
        return rows  # full-extent block is always legal
    nblocks = pl.cdiv(rows, MAX_TILE_ROWS)
    if rows >= SPLIT_MIN_ROWS:
        if nblocks < 2:
            nblocks = 2
        elif nblocks % 2:
            nblocks += 1
    tile = pl.cdiv(rows, nblocks)
    tile = ((tile + ROW_ALIGN - 1) // ROW_ALIGN) * ROW_ALIGN
    return min(tile, MAX_TILE_ROWS)


def scaled_sigmoid(x: jax.Array, alpha: float) -> jax.Array:
    """alpha * sigmoid(x / alpha), elementwise. Matches the PyTorch module."""
    orig_shape = x.shape
    orig_dtype = x.dtype
    n = x.size
    itemsize = jnp.dtype(orig_dtype).itemsize

    # Flatten (free); pad only when the total size is not a multiple of 128.
    x_flat = jnp.reshape(x, (-1,))
    pad = (-n) % LANE
    if pad:
        x_flat = jnp.pad(x_flat, (0, pad))
    rows = x_flat.size // LANE
    x2d = jnp.reshape(x_flat, (rows, LANE))

    tile_rows = _choose_tile_rows(rows)
    grid = (pl.cdiv(rows, tile_rows),)

    kernel = functools.partial(
        _scaled_sigmoid_kernel,
        alpha=float(alpha),
        inv_alpha=1.0 / float(alpha),
    )

    out2d = pl.pallas_call(
        kernel,
        out_shape=jax.ShapeDtypeStruct((rows, LANE), orig_dtype),
        grid_spec=pltpu.PrefetchScalarGridSpec(
            num_scalar_prefetch=0,
            grid=grid,
            in_specs=[pl.BlockSpec((tile_rows, LANE), lambda i: (i, 0))],
            out_specs=pl.BlockSpec((tile_rows, LANE), lambda i: (i, 0)),
        ),
        compiler_params=pltpu.CompilerParams(
            dimension_semantics=("parallel",),
            vmem_limit_bytes=32 * 1024 * 1024,
        ),
        cost_estimate=pl.CostEstimate(
            flops=4 * n,
            transcendentals=n,
            bytes_accessed=2 * n * itemsize,
        ),
    )(x2d)

    out_flat = jnp.reshape(out2d, (-1,))
    if pad:
        out_flat = out_flat[:n]
    return jnp.reshape(out_flat, orig_shape)


if __name__ == "__main__":
    # ScaledSigmoid has no learned parameters; alpha is a constructor constant.
    alpha = 2.5

    key = jax.random.PRNGKey(0)
    x = jax.random.normal(key, (2, 4, 16, 16), dtype=jnp.float32)  # NCHW

    y = scaled_sigmoid(x, alpha)
    jax.block_until_ready(y)

    # Reference check in plain JAX.
    y_ref = alpha * jax.nn.sigmoid(x / alpha)
    assert y.shape == x.shape and y.dtype == x.dtype
    assert jnp.max(jnp.abs(y - y_ref)) < 1e-5

    print("KERNEL_OK")
</pallas_src>

<mosaic_0001>
module attributes {stable_mosaic.version = 11 : i64} {
  func.func @_scaled_sigmoid_kernel(%arg0: i32, %arg1: memref<16x128xf32, #tpu.memory_space<vmem>>, %arg2: memref<16x128xf32, #tpu.memory_space<vmem>>) attributes {dimension_semantics = [#tpu.dimension_semantics<parallel>], iteration_bounds = array<i64: 1>, scalar_prefetch = 0 : i64, scratch_operands = 0 : i64, tpu.core_type = #tpu.core_type<tc>, window_params = [{transform_indices = @transform_0, window_bounds = array<i64: 16, 128>}, {transform_indices = @transform_1, window_bounds = array<i64: 16, 128>}]} {
    %c0 = arith.constant 0 : index
    %c0_0 = arith.constant 0 : index
    %0 = vector.load %arg1[%c0, %c0_0] : memref<16x128xf32, #tpu.memory_space<vmem>>, vector<16x128xf32>
    %cst = arith.constant 4.000000e-01 : f32
    %1 = vector.broadcast %cst : f32 to vector<16x128xf32>
    %2 = arith.mulf %0, %1 : vector<16x128xf32>
    %3 = arith.negf %2 : vector<16x128xf32>
    %4 = math.exp %3 : vector<16x128xf32>
    %cst_1 = arith.constant 1.000000e+00 : f32
    %5 = vector.broadcast %cst_1 : f32 to vector<16x128xf32>
    %6 = arith.addf %5, %4 : vector<16x128xf32>
    %7 = arith.divf %5, %6 : vector<16x128xf32>
    %cst_2 = arith.constant 2.500000e+00 : f32
    %8 = vector.broadcast %cst_2 : f32 to vector<16x128xf32>
    %9 = arith.mulf %8, %7 : vector<16x128xf32>
    %c0_3 = arith.constant 0 : index
    %c0_4 = arith.constant 0 : index
    %10 = vector.load %arg2[%c0_3, %c0_4] : memref<16x128xf32, #tpu.memory_space<vmem>>, vector<16x128xf32>
    tpu.vector_store %arg2[%c0_3, %c0_4], %9 {strides = array<i32>} : memref<16x128xf32, #tpu.memory_space<vmem>>, vector<16x128xf32>,
    return
  }
  func.func @transform_0(%arg0: i32) -> (i32, i32) {
    %c0_i32 = arith.constant 0 : i32
    %c0_i32_0 = arith.constant 0 : i32
    return %arg0, %c0_i32 : i32, i32
  }
  func.func @transform_1(%arg0: i32) -> (i32, i32) {
    %c0_i32 = arith.constant 0 : i32
    %c0_i32_0 = arith.constant 0 : i32
    return %arg0, %c0_i32 : i32, i32
  }
}

</mosaic_0001>

<llo_original>
// kernel: tpu_custom_call.1
$region0: #{tpu_custom_call.1}
  #allocation0 [shape = 'u32[]', space=smem, size = 0x4, offset = 0x4, fixed_abs, tag = 'smem constant byte address 0x4 - core index']
  #allocation1 [shape = 'u32[144,128]{1,0:T(1,128)}', space=vmem, size = 0x12000, scoped, tag = 'internal scratch']
  %s0 = inlined_call_operand.hbm [shape: f32[16,128], index: 0, kind: input, shape index: {}]
  %s1 = inlined_call_operand.hbm [shape: f32[16,128], index: 1, kind: output, shape index: {}]
  %s2 = sld [smem:[#allocation0]]
  $region18: #{tpu_custom_call.1} parent=0
    _
  %s4 = ssub.s32 1, %s2
  %s5 = scalar_select 0, %s4, %s2
  $region1: #{tpu_custom_call.1} parent=0
    #allocation2 [shape = 'u8[8192]{0}', space=vmem, size = 0x2000, scoped, tag = 'input window, operand 0, single buffered']
    #allocation3 [shape = 's32[1]{0}', space=sflag, size = 0x4, scoped, tag = 'scoped memory for tpu_custom_call.1']
    #allocation4 [shape = 's32[1]{0}', space=sflag, size = 0x4, scoped, tag = 'scoped memory for tpu_custom_call.1']
    #allocation5 [shape = 'u8[8192]{0}', space=vmem, size = 0x2000, scoped, tag = 'output window, operand 0, single buffered']
    %6 = vsyncpa [#allocation3], 0
    %7 = vsyncpa [#allocation4], 0
    // Predicated region
    $region2: #{tpu_custom_call.1} parent=1 // pred_check
      _
    $region3: #{tpu_custom_call.1} parent=1 // pred_check_branch
      %9 = sbr.rel (0) target = $region5
    $region4: #{tpu_custom_call.1} parent=1 // pred_region
      %s11 = ssub.s32 256, 256
      %12 = vsyncadd [#allocation3], %s11
      %s13 = sshll.u32 [#allocation2], 4
      %s14 = int_to_ptr.vmem [resolvable:$true] %s13
      %19 = dma.hbm_to_vmem [thread:$0]  %s0, 256, %s14, [#allocation3], 128, 128, 8
    $region5: #{tpu_custom_call.1} parent=1 // pred_fallthru
      _
    // Predicated region
    $region6: #{tpu_custom_call.1} parent=1 // pred_check
      _
    $region7: #{tpu_custom_call.1} parent=1 // pred_check_branch
      %21 = sbr.rel (0) target = $region9
    $region8: #{tpu_custom_call.1} parent=1 // pred_region
      %22 = dma.done [#allocation3], 256
    $region9: #{tpu_custom_call.1} parent=1 // pred_fallthru
      _
    %v23 = vld [vmem:[#allocation2] sm:$0xff]
    %v24 = vld [vmem:[#allocation2 + $0x8] sm:$0xff]
    %v25 = vmul.f32 %v23, 0.4
    %v26 = vmul.f32 %v24, 0.4
    %v27 = vxor.u32 %v25, 2147483648
    %v28 = vxor.u32 %v26, 2147483648
    %v29 = vmul.f32 %v27, 1.442695
    %v30 = vpow.pop %v29
    %v31 = vmul.f32 %v28, 1.442695
    %v32 = vpow.pop %v31
    %v33 = vadd.f32 %v30, 1.0
    %v34 = vadd.f32 %v32, 1.0
    %v35 = vrcp.pop %v33
    %v36 = vmul.f32 1.0, %v35
    %v37 = vrcp.pop %v34
    %v38 = vmul.f32 1.0, %v37
    %v39 = vmul.f32 %v36, 2.5
    %v40 = vmul.f32 %v38, 2.5
    %41 = vst [vmem:[#allocation5] sm:$0xff] %v39
    %42 = vst [vmem:[#allocation5 + $0x8] sm:$0xff] %v40
    // Predicated region
    $region10: #{tpu_custom_call.1} parent=1 // pred_check
      _
    $region11: #{tpu_custom_call.1} parent=1 // pred_check_branch
      %44 = sbr.rel (0) target = $region13
    $region12: #{tpu_custom_call.1} parent=1 // pred_region
      %s46 = ssub.s32 256, 256
      %47 = vsyncadd [#allocation4], %s46
      %s48 = sshll.u32 [#allocation5], 4
      %s49 = int_to_ptr.vmem [resolvable:$true] %s48
      %54 = dma.vmem_to_hbm [thread:$0]  %s49, 256, %s1, [#allocation4], 128, 128, 8
    $region13: #{tpu_custom_call.1} parent=1 // pred_fallthru
      _
    // Predicated region
    $region14: #{tpu_custom_call.1} parent=1 // pred_check
      _
    $region15: #{tpu_custom_call.1} parent=1 // pred_check_branch
      %56 = sbr.rel (0) target = $region17
    $region16: #{tpu_custom_call.1} parent=1 // pred_region
      %57 = dma.done [#allocation4], 256
    $region17: #{tpu_custom_call.1} parent=1 // pred_fallthru
      _
    %58 = vsyncpa [#allocation3], 1
    %59 = vsyncpa [#allocation4], 1

</llo_original>
